<compile_context>
chip_gen: v7x
topology: tpu7x:2x2x1
jax: 0.10.0
libtpu: 0.0.40
codegen_flags: <defaults>
</compile_context>

<pallas_src>
import functools

import jax
import jax.numpy as jnp
from jax.experimental import pallas as pl
from jax.experimental.pallas import tpu as pltpu


def _round_up(x, m):
    return ((x + m - 1) // m) * m


# ----------------------------------------------------------------------------
# Pallas kernel: single-block dot + bias (the nn.Linear of build_fc)
# ----------------------------------------------------------------------------
def fc_kernel(x_ref, w_ref, b_ref, o_ref):
    # x_ref: (tm, Fp)  w_ref: (Fp, tn)  b_ref: (1, tn)  o_ref: (tm, tn)
    # Whole reduction axis resident in VMEM -> one MXU pass, f32 accumulate,
    # f32 bias epilogue (safe on v5e: no bf16 VPU path needed).
    o_ref[...] = (
        jnp.dot(x_ref[...], w_ref[...], preferred_element_type=jnp.float32)
        + b_ref[...]
    ).astype(o_ref.dtype)


@functools.partial(jax.jit, static_argnames=("nb_classes", "compute_dtype"))
def linear_pallas(x, w_pad, b_pad, *, nb_classes, compute_dtype=jnp.bfloat16):
    """logits = x @ W + b with W/b pre-padded to (Fp, Cp)/(1, Cp) at build time.

    Only the activation is padded here (batch to the sublane-aligned tile; the
    feature axis only if FEAT is not already a multiple of 128).
    """
    B, F = x.shape
    Fp, Cp = w_pad.shape

    if compute_dtype is not None and x.dtype != compute_dtype:
        x = x.astype(compute_dtype)

    # Sublane packing: bf16 packs 16 rows per vreg, f32 packs 8.
    sub = 16 if x.dtype == jnp.bfloat16 else 8
    tm = min(_round_up(B, sub), 128)
    Bp = _round_up(B, tm)

    # One lane-dense class tile -> W block index constant over the grid, so W
    # is DMA'd exactly once even when Bp // tm > 1.
    tn = Cp if Cp <= 512 else 128

    # Pad the activation only; zeros along F contribute nothing to the dot and
    # padded batch rows are sliced off below.
    if (Bp, Fp) != (B, F):
        x = jnp.pad(x, ((0, Bp - B), (0, Fp - F)))

    grid = (Bp // tm, Cp // tn)

    # vmem limit from the actual double-buffered footprint (+ headroom),
    # instead of a flat 32 MiB reservation (v7x only has 64 MiB total VMEM).
    x_it = jnp.dtype(x.dtype).itemsize
    w_it = jnp.dtype(w_pad.dtype).itemsize
    footprint = 2 * (tm * Fp * x_it + Fp * tn * w_it + tn * 4 + tm * tn * 4)
    vmem_limit = min(max(4 * footprint, 8 * 1024 * 1024), 64 * 1024 * 1024)

    out_padded = pl.pallas_call(
        fc_kernel,
        out_shape=jax.ShapeDtypeStruct((Bp, Cp), jnp.float32),
        grid_spec=pltpu.PrefetchScalarGridSpec(
            num_scalar_prefetch=0,
            grid=grid,
            in_specs=[
                pl.BlockSpec((tm, Fp), lambda i, j: (i, 0)),
                pl.BlockSpec((Fp, tn), lambda i, j: (0, j)),
                pl.BlockSpec((1, tn), lambda i, j: (0, j)),
            ],
            out_specs=pl.BlockSpec((tm, tn), lambda i, j: (i, j)),
        ),
        compiler_params=pltpu.CompilerParams(
            # Both axes independent -> can shard across v7x's 2 TensorCores
            # whenever Bp//tm or Cp//tn exceeds 1.
            dimension_semantics=("parallel", "parallel"),
            vmem_limit_bytes=vmem_limit,
        ),
    )(x, w_pad, b_pad)

    return out_padded[:B, :nb_classes]


# ----------------------------------------------------------------------------
# BaseNet equivalent (parameter bookkeeping + FC head)
# ----------------------------------------------------------------------------
class BaseNetPallas:
    def __init__(self, **kwargs):
        self.nb_classes = kwargs.get('num_classes', 2)
        self.Chans = kwargs.get('channels', 64)
        self.wavelet = kwargs.get('wavelet', 30)
        self.dropoutRate = kwargs.get('dropoutRate', 0.5)
        self.dropoutType = kwargs.get('dropoutType', 'Dropout')
        self.squeeze_dim = kwargs.get('squeeze_dim', 1)
        self.F1 = kwargs.get('F1', 8)
        self.F2 = kwargs.get('F2', 16)
        self.poolKern1 = kwargs.get('poolKern1', 4)
        self.poolKern2 = kwargs.get('poolKern2', 8)
        self.D = kwargs.get('D', 2)
        self.kernLength = kwargs.get('kernLength', 64)
        # TODO(synk): dropout (nn.Dropout / nn.Dropout2d) is an inference no-op
        # and forward() is @abstractmethod in the PyTorch source, so only
        # build_fc's Linear head is realized as a Pallas kernel.
        self.compute_dtype = jnp.bfloat16
        self.fc_w = None        # padded (Fp, Cp), compute_dtype (bf16 default)
        self.fc_b = None        # padded (1, Cp), f32
        self.fc_w_full = None   # unpadded f32 (for reference checks)
        self.fc_b_full = None

    def build_fc(self, feat_dim, key, compute_dtype=jnp.bfloat16):
        """Eagerly create Linear(feat_dim, nb_classes) params, pre-padded to
        lane/sublane-aligned shapes and pre-cast to the MXU input dtype —
        all outside any jit trace (no lazy mutation / per-call pads)."""
        if self.fc_w is None:
            kw, kb = jax.random.split(key)
            bound = 1.0 / (feat_dim ** 0.5)  # nn.Linear uniform(-1/sqrt(fan_in))
            w = jax.random.uniform(
                kw, (feat_dim, self.nb_classes), jnp.float32, -bound, bound)
            b = jax.random.uniform(
                kb, (1, self.nb_classes), jnp.float32, -bound, bound)
            self.fc_w_full, self.fc_b_full = w, b

            Fp = _round_up(feat_dim, 128)
            Cp = _round_up(self.nb_classes, 128)   # lane-dense output slab
            w_pad = jnp.pad(w, ((0, Fp - feat_dim), (0, Cp - self.nb_classes)))
            b_pad = jnp.pad(b, ((0, 0), (0, Cp - self.nb_classes)))

            self.compute_dtype = compute_dtype
            self.fc_w = (w_pad.astype(compute_dtype)
                         if compute_dtype is not None else w_pad)
            self.fc_b = b_pad  # bias stays f32 (f32 epilogue)

    def classify(self, x):
        """Apply the FC head via the Pallas kernel (x: (B, FEAT) flattened)."""
        assert self.fc_w is not None, "call build_fc(feat_dim, key) first"
        return linear_pallas(
            x, self.fc_w, self.fc_b,
            nb_classes=self.nb_classes,
            compute_dtype=self.compute_dtype,
        )


if __name__ == "__main__":
    key = jax.random.PRNGKey(0)
    k_x, k_fc = jax.random.split(key)

    # Flattened feature map consistent with the module's defaults:
    # F2=16 filters * 8 temporal positions after pooling -> FEAT=128.
    B, FEAT = 2, 128
    x = jax.random.normal(k_x, (B, FEAT), dtype=jnp.float32)

    net = BaseNetPallas(num_classes=2)
    net.build_fc(FEAT, k_fc)          # params created/padded outside traced path
    logits = net.classify(x)
    logits = jax.block_until_ready(logits)

    # reference check against plain JAX (f32). bf16 MXU inputs + f32 accumulate
    # => loose tolerance vs. the full-f32 reference.
    ref = x @ net.fc_w_full + net.fc_b_full
    assert logits.shape == (B, net.nb_classes)
    assert jnp.allclose(logits, ref, atol=2e-2, rtol=2e-2), "mismatch vs reference"

    print("KERNEL_OK")
</pallas_src>

<mosaic_0001>
module attributes {stable_mosaic.version = 11 : i64} {
  func.func @fc_kernel(%arg0: i32, %arg1: i32, %arg2: memref<16x128xbf16, #tpu.memory_space<vmem>>, %arg3: memref<128x128xbf16, #tpu.memory_space<vmem>>, %arg4: memref<1x128xf32, #tpu.memory_space<vmem>>, %arg5: memref<16x128xf32, #tpu.memory_space<vmem>>) attributes {dimension_semantics = [#tpu.dimension_semantics<parallel>, #tpu.dimension_semantics<parallel>], iteration_bounds = array<i64: 1, 1>, scalar_prefetch = 0 : i64, scratch_operands = 0 : i64, tpu.core_type = #tpu.core_type<tc>, window_params = [{transform_indices = @transform_0, window_bounds = array<i64: 16, 128>}, {transform_indices = @transform_1, window_bounds = array<i64: 128, 128>}, {transform_indices = @transform_2, window_bounds = array<i64: 1, 128>}, {transform_indices = @transform_3, window_bounds = array<i64: 16, 128>}]} {
    %c0 = arith.constant 0 : index
    %c0_0 = arith.constant 0 : index
    %0 = vector.load %arg2[%c0, %c0_0] : memref<16x128xbf16, #tpu.memory_space<vmem>>, vector<16x128xbf16>
    %c0_1 = arith.constant 0 : index
    %c0_2 = arith.constant 0 : index
    %1 = vector.load %arg3[%c0_1, %c0_2] : memref<128x128xbf16, #tpu.memory_space<vmem>>, vector<128x128xbf16>
    %cst = arith.constant dense<0.000000e+00> : vector<16x128xf32>
    %2 = tpu.matmul %0, %1, %cst {dimension_numbers = #tpu.dot_dimension_numbers<[1], [0], [0], [1], [0, 0, 1, 1], [], []>} : vector<16x128xbf16>, vector<128x128xbf16>, vector<16x128xf32> -> vector<16x128xf32>
    %c0_3 = arith.constant 0 : index
    %c0_4 = arith.constant 0 : index
    %3 = vector.load %arg4[%c0_3, %c0_4] : memref<1x128xf32, #tpu.memory_space<vmem>>, vector<1x128xf32>
    %4 = vector.broadcast %3 : vector<1x128xf32> to vector<16x128xf32>
    %5 = arith.addf %2, %4 : vector<16x128xf32>
    %c0_5 = arith.constant 0 : index
    %c0_6 = arith.constant 0 : index
    %6 = vector.load %arg5[%c0_5, %c0_6] : memref<16x128xf32, #tpu.memory_space<vmem>>, vector<16x128xf32>
    tpu.vector_store %arg5[%c0_5, %c0_6], %5 {strides = array<i32>} : memref<16x128xf32, #tpu.memory_space<vmem>>, vector<16x128xf32>,
    return
  }
  func.func @transform_0(%arg0: i32, %arg1: i32) -> (i32, i32) {
    %c0_i32 = arith.constant 0 : i32
    %c0_i32_0 = arith.constant 0 : i32
    return %arg0, %c0_i32 : i32, i32
  }
  func.func @transform_1(%arg0: i32, %arg1: i32) -> (i32, i32) {
    %c0_i32 = arith.constant 0 : i32
    %c0_i32_0 = arith.constant 0 : i32
    return %c0_i32, %arg1 : i32, i32
  }
  func.func @transform_2(%arg0: i32, %arg1: i32) -> (i32, i32) {
    %c0_i32 = arith.constant 0 : i32
    %c0_i32_0 = arith.constant 0 : i32
    return %c0_i32, %arg1 : i32, i32
  }
  func.func @transform_3(%arg0: i32, %arg1: i32) -> (i32, i32) {
    %c0_i32 = arith.constant 0 : i32
    return %arg0, %arg1 : i32, i32
  }
}

</mosaic_0001>

<llo_original>
// kernel: linear_pallas.1
$region0: #{linear_pallas.1}
  #allocation0 [shape = 'u32[]', space=smem, size = 0x4, offset = 0x4, fixed_abs, tag = 'smem constant byte address 0x4 - core index']
  #allocation1 [shape = 'u32[144,128]{1,0:T(1,128)}', space=vmem, size = 0x12000, scoped, tag = 'internal scratch']
  %s0 = inlined_call_operand.vmem [shape: bf16[16,128], index: 0, kind: input, shape index: {}]
  %s1 = inlined_call_operand.hbm [shape: bf16[128,128], index: 1, kind: input, shape index: {}]
  %s2 = inlined_call_operand.vmem [shape: f32[1,128], index: 2, kind: input, shape index: {}]
  %s3 = inlined_call_operand.vmem [shape: f32[16,128], index: 3, kind: output, shape index: {}]
  %s4 = sld [smem:[#allocation0]]
  $region26: #{linear_pallas.1} parent=0
    _
  %s6 = ssub.s32 1, %s4
  %s7 = scalar_select 0, %s6, %s4
  $region1: #{linear_pallas.1} parent=0
    #allocation2 [shape = 'u8[32768]{0}', space=vmem, size = 0x8000, scoped, tag = 'input window, operand 1, single buffered']
    #allocation3 [shape = 's32[1]{0}', space=sflag, size = 0x4, scoped, tag = 'scoped memory for linear_pallas.1']
    %8 = vsyncpa [#allocation3], 0
    // Predicated region
    $region2: #{linear_pallas.1} parent=1 // pred_check
      _
    $region3: #{linear_pallas.1} parent=1 // pred_check_branch
      %10 = sbr.rel (0) target = $region5
    $region4: #{linear_pallas.1} parent=1 // pred_region
      _
    $region5: #{linear_pallas.1} parent=1 // pred_fallthru
      _
    // Predicated region
    $region6: #{linear_pallas.1} parent=1 // pred_check
      _
    $region7: #{linear_pallas.1} parent=1 // pred_check_branch
      %12 = sbr.rel (0) target = $region9
    $region8: #{linear_pallas.1} parent=1 // pred_region
      %s14 = ssub.s32 1024, 1024
      %15 = vsyncadd [#allocation3], %s14
      %s16 = sshll.u32 [#allocation2], 4
      %s17 = int_to_ptr.vmem [resolvable:$true] %s16
      %22 = dma.hbm_to_vmem [thread:$0]  %s1, 1024, %s17, [#allocation3], 64, 64, 4
    $region9: #{linear_pallas.1} parent=1 // pred_fallthru
      _
    // Predicated region
    $region10: #{linear_pallas.1} parent=1 // pred_check
      _
    $region11: #{linear_pallas.1} parent=1 // pred_check_branch
      %24 = sbr.rel (0) target = $region13
    $region12: #{linear_pallas.1} parent=1 // pred_region
      _
    $region13: #{linear_pallas.1} parent=1 // pred_fallthru
      _
    // Predicated region
    $region14: #{linear_pallas.1} parent=1 // pred_check
      _
    $region15: #{linear_pallas.1} parent=1 // pred_check_branch
      %26 = sbr.rel (0) target = $region17
    $region16: #{linear_pallas.1} parent=1 // pred_region
      %27 = dma.done [#allocation3], 1024
    $region17: #{linear_pallas.1} parent=1 // pred_fallthru
      _
    %v29 = vld [vmem:[%s0] sm:$0xf]
    %v30 = vld [vmem:[%s0 + $0x4] sm:$0xf]
    %v31 = vld [vmem:[#allocation2] sm:$0xf]
    %v32 = vld [vmem:[#allocation2 + $0x4] sm:$0xf]
    %v33 = vld [vmem:[#allocation2 + $0x8] sm:$0xf]
    %v34 = vld [vmem:[#allocation2 + $0xc] sm:$0xf]
    %v35 = vld [vmem:[#allocation2 + $0x10] sm:$0xf]
    %v36 = vld [vmem:[#allocation2 + $0x14] sm:$0xf]
    %v37 = vld [vmem:[#allocation2 + $0x18] sm:$0xf]
    %v38 = vld [vmem:[#allocation2 + $0x1c] sm:$0xf]
    %v39 = vld [vmem:[#allocation2 + $0x20] sm:$0xf]
    %v40 = vld [vmem:[#allocation2 + $0x24] sm:$0xf]
    %v41 = vld [vmem:[#allocation2 + $0x28] sm:$0xf]
    %v42 = vld [vmem:[#allocation2 + $0x2c] sm:$0xf]
    %v43 = vld [vmem:[#allocation2 + $0x30] sm:$0xf]
    %v44 = vld [vmem:[#allocation2 + $0x34] sm:$0xf]
    %v45 = vld [vmem:[#allocation2 + $0x38] sm:$0xf]
    %v46 = vld [vmem:[#allocation2 + $0x3c] sm:$0xf]
    %v47 = vld [vmem:[%s2] sm:$0x1]
    %v49 = vlaneseq
    %v50 = vshrl.u32 %v49, 7
    %v51 = vsub.s32 0, %v50
    %v52 = vrot.slane %v47, %v51
    %v56 = vunpack.c.l.b16 %v29
    %v57 = vunpack.c.l.b16 %v30
    %v58 = vpack.c.b16 %v57, %v56
    %v76 = vunpack.c.l.b16 %v31
    %v77 = vunpack.c.l.b16 %v32
    %v78 = vunpack.c.l.b16 %v33
    %v79 = vunpack.c.l.b16 %v34
    %v80 = vunpack.c.l.b16 %v35
    %v81 = vunpack.c.l.b16 %v36
    %v82 = vunpack.c.l.b16 %v37
    %v83 = vunpack.c.l.b16 %v38
    %v84 = vunpack.c.l.b16 %v39
    %v85 = vunpack.c.l.b16 %v40
    %v86 = vunpack.c.l.b16 %v41
    %v87 = vunpack.c.l.b16 %v42
    %v88 = vunpack.c.l.b16 %v43
    %v89 = vunpack.c.l.b16 %v44
    %v90 = vunpack.c.l.b16 %v45
    %v91 = vunpack.c.l.b16 %v46
    %v92 = vpack.c.b16 %v77, %v76
    %v93 = vpack.c.b16 %v79, %v78
    %v94 = vpack.c.b16 %v81, %v80
    %v95 = vpack.c.b16 %v83, %v82
    %v96 = vpack.c.b16 %v85, %v84
    %v97 = vpack.c.b16 %v87, %v86
    %v98 = vpack.c.b16 %v89, %v88
    %v99 = vpack.c.b16 %v91, %v90
    %108 = vmatprep.subr.bf16.mxu0 0
    %109 = vmatpush1.bf16.msra.mxu0 %v92
    %110 = vmatprep.subr.bf16.mxu0 0
    %111 = vmatpush1.bf16.msra.mxu0 %v93
    %112 = vmatprep.subr.bf16.mxu0 0
    %113 = vmatpush1.bf16.msra.mxu0 %v94
    %114 = vmatprep.subr.bf16.mxu0 0
    %115 = vmatpush1.bf16.msra.mxu0 %v95
    %116 = vmatprep.subr.bf16.mxu0 0
    %117 = vmatpush1.bf16.msra.mxu0 %v96
    %118 = vmatprep.subr.bf16.mxu0 0
    %119 = vmatpush1.bf16.msra.mxu0 %v97
    %120 = vmatprep.subr.bf16.mxu0 0
    %121 = vmatpush1.bf16.msra.mxu0 %v98
    %122 = vmatprep.subr.bf16.mxu0 0
    %123 = vmatpush1.bf16.msra.mxu0 %v99
    %124 = vmatprep.subr.bf16.mxu0 0
    %125 = vmatpush1.bf16.msra.mxu0 0
    %126 = vmatprep.subr.bf16.mxu0 0
    %127 = vmatpush1.bf16.msra.mxu0 0
    %128 = vmatprep.subr.bf16.mxu0 0
    %129 = vmatpush1.bf16.msra.mxu0 0
    %130 = vmatprep.subr.bf16.mxu0 0
    %131 = vmatpush1.bf16.msra.mxu0 0
    %132 = vmatprep.subr.bf16.mxu0 0
    %133 = vmatpush1.bf16.msra.mxu0 0
    %134 = vmatprep.subr.bf16.mxu0 0
    %135 = vmatpush1.bf16.msra.mxu0 0
    %136 = vmatprep.subr.bf16.mxu0 0
    %137 = vmatpush1.bf16.msra.mxu0 0
    %138 = vmatprep.subr.bf16.mxu0 0
    %139 = vmatpush1.bf16.msra.mxu0 0
    %140 = vmatprep.mubr.bf16.mxu0 0
    %141 = vmatmul.mubr.bf16.gmra.mrb[0].mxu0 %v58
    %v142 = vpop.f32.mrb[0].mxu0
    %v143 = vadd.f32 %v52, %v142
    %v144 = vpop.f32.mrb[0].mxu0
    %v145 = vpop.f32.mrb[0].mxu0
    %v146 = vadd.f32 %v52, %v145
    %v147 = vpop.f32.mrb[0].mxu0
    %148 = vdwg.mxu0
    %149 = vst [vmem:[%s3] sm:$0xff] %v143
    %150 = vst [vmem:[%s3 + $0x8] sm:$0xff] %v146
    // Predicated region
    $region18: #{linear_pallas.1} parent=1 // pred_check
      _
    $region19: #{linear_pallas.1} parent=1 // pred_check_branch
      %152 = sbr.rel (0) target = $region21
    $region20: #{linear_pallas.1} parent=1 // pred_region
      _
    $region21: #{linear_pallas.1} parent=1 // pred_fallthru
      _
    // Predicated region
    $region22: #{linear_pallas.1} parent=1 // pred_check
      _
    $region23: #{linear_pallas.1} parent=1 // pred_check_branch
      %154 = sbr.rel (0) target = $region25
    $region24: #{linear_pallas.1} parent=1 // pred_region
      _
    $region25: #{linear_pallas.1} parent=1 // pred_fallthru
      _
    %155 = vsyncpa [#allocation3], 1

</llo_original>
